<compile_context>
chip_gen: v6e
topology: v6e:2x2x1
jax: 0.10.0
libtpu: 0.0.40
codegen_flags: <defaults>
</compile_context>

<pallas_src>
import functools
import math

import jax
import jax.numpy as jnp
from jax.experimental import pallas as pl
from jax.experimental.pallas import tpu as pltpu


def _round_up(x, m):
    return ((x + m - 1) // m) * m


def _fused_mlp_kernel(*refs, num_hidden: int, scalar_out: bool):
    """Fused MLLinear forward.

    refs layout:
      refs[0]                      : x        [TM, K0]
      refs[1+2j], refs[2+2j]       : W_j [K_j, N_j], b_j [1, N_j]  (hidden, ReLU)
      refs[-3], refs[-2]           : W_out, b_out   (final Linear, no ReLU)
      refs[-1]                     : o_ref    [TM, out_size]
    """
    x_ref = refs[0]
    o_ref = refs[-1]

    h = x_ref[...].astype(jnp.float32)
    idx = 1
    for _ in range(num_hidden):
        w_ref = refs[idx]
        b_ref = refs[idx + 1]
        idx += 2
        h = jnp.dot(h, w_ref[...], preferred_element_type=jnp.float32)
        h = jnp.maximum(h + b_ref[...], 0.0)

    w_out_ref = refs[idx]
    b_out_ref = refs[idx + 1]
    if scalar_out:
        # output_size == 1: VPU broadcast multiply + lane (XLU) reduction with
        # keepdims instead of a degenerate 1-column MXU matmul.
        y = jnp.sum(h * w_out_ref[...], axis=-1, keepdims=True)      # [TM, 1]
        o_ref[...] = (y + b_out_ref[...]).astype(o_ref.dtype)
    else:
        y = jnp.dot(h, w_out_ref[...], preferred_element_type=jnp.float32)
        o_ref[...] = (y + b_out_ref[...]).astype(o_ref.dtype)


def mllinear_forward(params, x, *, block_m=512):
    """Forward pass of MLLinear: ReLU(Linear(...)) chain, Linear, squeeze(-1)."""
    hidden = params["hidden"]
    w_out, b_out = params["output"]

    lead = x.shape[:-1]
    K0 = x.shape[-1]
    x2 = x.reshape(-1, K0)                 # flatten leading dims (nn.Linear style)
    M = x2.shape[0]
    k_last, out_size = w_out.shape
    scalar_out = out_size == 1

    # Batch tiling: choose the number of tiles first, then the smallest
    # sublane-aligned tile that covers the batch (minimal padding waste).
    num_blocks = max(1, pl.cdiv(M, block_m))
    tm = _round_up(pl.cdiv(M, num_blocks), 8)
    m_pad = tm * num_blocks
    x_p = jnp.pad(x2, ((0, m_pad - M), (0, 0))) if m_pad != M else x2

    # Assemble fused inputs / specs: x tiled over the grid, all params at a
    # constant block index so they stay VMEM-resident across grid steps.
    inputs = [x_p]
    in_specs = [pl.BlockSpec((tm, K0), lambda i: (i, 0))]
    for w, b in hidden:
        k, n = w.shape
        inputs += [w, b.reshape(1, n)]
        in_specs += [
            pl.BlockSpec((k, n), lambda i: (0, 0)),
            pl.BlockSpec((1, n), lambda i: (0, 0)),
        ]

    if scalar_out:
        inputs += [w_out.reshape(1, k_last), b_out.reshape(1, 1)]
        in_specs += [
            pl.BlockSpec((1, k_last), lambda i: (0, 0)),
            pl.BlockSpec((1, 1), lambda i: (0, 0)),
        ]
    else:
        inputs += [w_out, b_out.reshape(1, out_size)]
        in_specs += [
            pl.BlockSpec((k_last, out_size), lambda i: (0, 0)),
            pl.BlockSpec((1, out_size), lambda i: (0, 0)),
        ]

    out_shape = jax.ShapeDtypeStruct((m_pad, out_size), jnp.float32)
    out_spec = pl.BlockSpec((tm, out_size), lambda i: (i, 0))

    kernel = functools.partial(
        _fused_mlp_kernel, num_hidden=len(hidden), scalar_out=scalar_out
    )

    if num_blocks == 1:
        # Single tile: no grid at all (skip the 1-step grid prologue/epilogue);
        # full arrays are placed in VMEM and the kernel runs once.
        out = pl.pallas_call(kernel, out_shape=out_shape)(*inputs)
    else:
        out = pl.pallas_call(
            kernel,
            out_shape=out_shape,
            grid_spec=pltpu.PrefetchScalarGridSpec(
                num_scalar_prefetch=0,
                grid=(num_blocks,),
                in_specs=in_specs,
                out_specs=out_spec,
            ),
            compiler_params=pltpu.CompilerParams(
                # batch axis is independent -> shard across v7x's 2 TCs
                dimension_semantics=("parallel",)
            ),
        )(*inputs)

    out = out[:M]
    if scalar_out:
        return out[:, 0].reshape(lead)       # torch.squeeze(..., -1)
    return out.reshape(*lead, out_size)


# ------------------------- parameter construction -------------------------

def xavier_uniform(key, in_s, out_s):
    # matches torch.nn.init.xavier_uniform_ on a weight of shape [out, in],
    # stored here as [in, out]
    bound = math.sqrt(6.0 / (in_s + out_s))
    return jax.random.uniform(key, (in_s, out_s), jnp.float32, -bound, bound)


def make_mllinear_params(key, linear_size, output_size):
    """Deterministic synthetic parameters mirroring MLLinear.__init__."""
    params = {"hidden": [], "output": None}
    for in_s, out_s in zip(linear_size[:-1], linear_size[1:]):
        key, kw, kb = jax.random.split(key, 3)
        w = xavier_uniform(kw, in_s, out_s)
        bb = 1.0 / math.sqrt(in_s)  # PyTorch default bias init
        b = jax.random.uniform(kb, (out_s,), jnp.float32, -bb, bb)
        params["hidden"].append((w, b))
    key, kw, kb = jax.random.split(key, 3)
    in_s = linear_size[-1]
    w = xavier_uniform(kw, in_s, output_size)
    bb = 1.0 / math.sqrt(in_s)
    b = jax.random.uniform(kb, (output_size,), jnp.float32, -bb, bb)
    params["output"] = (w, b)
    return params


def _reference_forward(params, x):
    out = x
    for w, b in params["hidden"]:
        out = jnp.maximum(out @ w + b, 0.0)
    w, b = params["output"]
    out = out @ w + b
    if w.shape[1] == 1:
        return out[..., 0]
    return out


# ----------------------------------- main ----------------------------------

if __name__ == "__main__":
    key = jax.random.PRNGKey(0)
    kp, kx = jax.random.split(key)

    linear_size = [32, 64, 32]   # two hidden Linear+ReLU layers
    output_size = 1              # final Linear -> squeeze(-1) gives [batch]
    batch = 8

    params = make_mllinear_params(kp, linear_size, output_size)
    x = jax.random.normal(kx, (batch, linear_size[0]), jnp.float32)

    # 1) tiny batch: single fused invocation, no grid
    y = mllinear_forward(params, x)
    jax.block_until_ready(y)
    ref = _reference_forward(params, x)
    assert y.shape == (batch,), y.shape
    assert jnp.allclose(y, ref, atol=1e-4, rtol=1e-4)

    # 2) larger batch (not a multiple of the tile): exercises the M-tiled
    #    "parallel" grid path plus padding/slicing
    x_big = jax.random.normal(jax.random.PRNGKey(1), (600, linear_size[0]),
                              jnp.float32)
    y_big = mllinear_forward(params, x_big)
    jax.block_until_ready(y_big)
    ref_big = _reference_forward(params, x_big)
    assert y_big.shape == (600,), y_big.shape
    assert jnp.allclose(y_big, ref_big, atol=1e-4, rtol=1e-4)

    # 3) output_size > 1: exercises the MXU final-layer path (squeeze is no-op)
    params4 = make_mllinear_params(jax.random.PRNGKey(2), linear_size, 4)
    y4 = mllinear_forward(params4, x)
    jax.block_until_ready(y4)
    ref4 = _reference_forward(params4, x)
    assert y4.shape == (batch, 4), y4.shape
    assert jnp.allclose(y4, ref4, atol=1e-4, rtol=1e-4)

    # 4) >2-D input: leading dims flattened, squeeze(-1) keeps them
    x3 = jax.random.normal(jax.random.PRNGKey(3), (2, 5, linear_size[0]),
                           jnp.float32)
    y3 = mllinear_forward(params, x3)
    jax.block_until_ready(y3)
    ref3 = _reference_forward(params, x3)
    assert y3.shape == (2, 5), y3.shape
    assert jnp.allclose(y3, ref3, atol=1e-4, rtol=1e-4)

    print("KERNEL_OK")
</pallas_src>

<mosaic_0001>
module attributes {stable_mosaic.version = 11 : i64} {
  func.func @_fused_mlp_kernel(%arg0: memref<8x32xf32, #tpu.memory_space<vmem>>, %arg1: memref<32x64xf32, #tpu.memory_space<vmem>>, %arg2: memref<1x64xf32, #tpu.memory_space<vmem>>, %arg3: memref<64x32xf32, #tpu.memory_space<vmem>>, %arg4: memref<1x32xf32, #tpu.memory_space<vmem>>, %arg5: memref<1x32xf32, #tpu.memory_space<vmem>>, %arg6: memref<1x1xf32, #tpu.memory_space<vmem>>, %arg7: memref<8x1xf32, #tpu.memory_space<vmem>>) attributes {dimension_semantics = [], scalar_prefetch = 0 : i64, scratch_operands = 0 : i64, tpu.core_type = #tpu.core_type<tc>} {
    %c0 = arith.constant 0 : index
    %c0_0 = arith.constant 0 : index
    %0 = vector.load %arg0[%c0, %c0_0] : memref<8x32xf32, #tpu.memory_space<vmem>>, vector<8x32xf32>
    %c0_1 = arith.constant 0 : index
    %c0_2 = arith.constant 0 : index
    %1 = vector.load %arg1[%c0_1, %c0_2] : memref<32x64xf32, #tpu.memory_space<vmem>>, vector<32x64xf32>
    %cst = arith.constant dense<0.000000e+00> : vector<8x64xf32>
    %2 = tpu.matmul %0, %1, %cst {dimension_numbers = #tpu.dot_dimension_numbers<[1], [0], [0], [1], [0, 0, 1, 1], [], []>} : vector<8x32xf32>, vector<32x64xf32>, vector<8x64xf32> -> vector<8x64xf32>
    %c0_3 = arith.constant 0 : index
    %c0_4 = arith.constant 0 : index
    %3 = vector.load %arg2[%c0_3, %c0_4] : memref<1x64xf32, #tpu.memory_space<vmem>>, vector<1x64xf32>
    %4 = vector.broadcast %3 : vector<1x64xf32> to vector<8x64xf32>
    %5 = arith.addf %2, %4 : vector<8x64xf32>
    %cst_5 = arith.constant 0.000000e+00 : f32
    %6 = vector.broadcast %cst_5 : f32 to vector<8x64xf32>
    %7 = arith.maximumf %5, %6 : vector<8x64xf32>
    %c0_6 = arith.constant 0 : index
    %c0_7 = arith.constant 0 : index
    %8 = vector.load %arg3[%c0_6, %c0_7] : memref<64x32xf32, #tpu.memory_space<vmem>>, vector<64x32xf32>
    %cst_8 = arith.constant dense<0.000000e+00> : vector<8x32xf32>
    %9 = tpu.matmul %7, %8, %cst_8 {dimension_numbers = #tpu.dot_dimension_numbers<[1], [0], [0], [1], [0, 0, 1, 1], [], []>} : vector<8x64xf32>, vector<64x32xf32>, vector<8x32xf32> -> vector<8x32xf32>
    %c0_9 = arith.constant 0 : index
    %c0_10 = arith.constant 0 : index
    %10 = vector.load %arg4[%c0_9, %c0_10] : memref<1x32xf32, #tpu.memory_space<vmem>>, vector<1x32xf32>
    %11 = vector.broadcast %10 : vector<1x32xf32> to vector<8x32xf32>
    %12 = arith.addf %9, %11 : vector<8x32xf32>
    %cst_11 = arith.constant 0.000000e+00 : f32
    %13 = vector.broadcast %cst_11 : f32 to vector<8x32xf32>
    %14 = arith.maximumf %12, %13 : vector<8x32xf32>
    %c0_12 = arith.constant 0 : index
    %c0_13 = arith.constant 0 : index
    %15 = vector.load %arg5[%c0_12, %c0_13] : memref<1x32xf32, #tpu.memory_space<vmem>>, vector<1x32xf32>
    %16 = vector.broadcast %15 : vector<1x32xf32> to vector<8x32xf32>
    %17 = arith.mulf %14, %16 : vector<8x32xf32>
    %cst_14 = arith.constant dense<0.000000e+00> : vector<8xf32>
    %18 = vector.multi_reduction <add>, %17, %cst_14 [1] : vector<8x32xf32> to vector<8xf32>
    %19 = vector.shape_cast %18 : vector<8xf32> to vector<8x1xf32>
    %c0_15 = arith.constant 0 : index
    %c0_16 = arith.constant 0 : index
    %20 = vector.load %arg6[%c0_15, %c0_16] : memref<1x1xf32, #tpu.memory_space<vmem>>, vector<1x1xf32>
    %21 = vector.broadcast %20 : vector<1x1xf32> to vector<8x1xf32>
    %22 = arith.addf %19, %21 : vector<8x1xf32>
    %c0_17 = arith.constant 0 : index
    %c0_18 = arith.constant 0 : index
    %23 = vector.load %arg7[%c0_17, %c0_18] : memref<8x1xf32, #tpu.memory_space<vmem>>, vector<8x1xf32>
    tpu.vector_store %arg7[%c0_17, %c0_18], %22 {strides = array<i32>} : memref<8x1xf32, #tpu.memory_space<vmem>>, vector<8x1xf32>,
    return
  }
}

</mosaic_0001>

<llo_original>
// kernel: tpu_custom_call.1
$region0: #{tpu_custom_call.1}
  #allocation0 [shape = 'u32[]', space=smem, size = 0x4, offset = 0x4, fixed_abs, tag = 'smem constant byte address 0x4 - core index']
  #allocation1 [shape = 'u32[144,128]{1,0:T(1,128)}', space=vmem, size = 0x12000, scoped, tag = 'internal scratch']
  #allocation2 [shape = 'f32[1,1]{1,0:T(1,128)S(1)}', space=vmem, size = 0x200, scoped, tag = 'scoped memory for tpu_custom_call.1']
  %s0 = inlined_call_operand.vmem [shape: f32[8,32], index: 0, kind: input, shape index: {}]
  %s1 = inlined_call_operand.vmem [shape: f32[32,64], index: 1, kind: input, shape index: {}]
  %s2 = inlined_call_operand.vmem [shape: f32[1,64], index: 2, kind: input, shape index: {}]
  %s3 = inlined_call_operand.vmem [shape: f32[64,32], index: 3, kind: input, shape index: {}]
  %s4 = inlined_call_operand.vmem [shape: f32[1,32], index: 4, kind: input, shape index: {}]
  %s5 = inlined_call_operand.vmem [shape: f32[1,32], index: 5, kind: input, shape index: {}]
  %s6 = inlined_call_operand.<no memory space> [shape: f32[1,1], index: 6, kind: input, shape index: {}]
  %s7 = inlined_call_operand.vmem [shape: f32[8,1], index: 7, kind: output, shape index: {}]
  %s8 = sld [smem:[#allocation0]]
  $region38: #{tpu_custom_call.1} parent=0
    _
  %s10 = ssub.s32 1, %s8
  %s11 = scalar_select 0, %s10, %s8
  %v12 = vstv %s6
  %13 = vst [vmem:[#allocation2] sm:$0x1] %v12
  // Predicated region
  $region2: #{tpu_custom_call.1} parent=0 // pred_check
    _
  $region3: #{tpu_custom_call.1} parent=0 // pred_check_branch
    %15 = sbr.rel (0) target = $region5
  $region4: #{tpu_custom_call.1} parent=0 // pred_region
    _
  $region5: #{tpu_custom_call.1} parent=0 // pred_fallthru
    _
  // Predicated region
  $region6: #{tpu_custom_call.1} parent=0 // pred_check
    _
  $region7: #{tpu_custom_call.1} parent=0 // pred_check_branch
    %17 = sbr.rel (0) target = $region9
  $region8: #{tpu_custom_call.1} parent=0 // pred_region
    _
  $region9: #{tpu_custom_call.1} parent=0 // pred_fallthru
    _
  // Predicated region
  $region10: #{tpu_custom_call.1} parent=0 // pred_check
    _
  $region11: #{tpu_custom_call.1} parent=0 // pred_check_branch
    %19 = sbr.rel (0) target = $region13
  $region12: #{tpu_custom_call.1} parent=0 // pred_region
    _
  $region13: #{tpu_custom_call.1} parent=0 // pred_fallthru
    _
  // Predicated region
  $region14: #{tpu_custom_call.1} parent=0 // pred_check
    _
  $region15: #{tpu_custom_call.1} parent=0 // pred_check_branch
    %21 = sbr.rel (0) target = $region17
  $region16: #{tpu_custom_call.1} parent=0 // pred_region
    _
  $region17: #{tpu_custom_call.1} parent=0 // pred_fallthru
    _
  // Predicated region
  $region18: #{tpu_custom_call.1} parent=0 // pred_check
    _
  $region19: #{tpu_custom_call.1} parent=0 // pred_check_branch
    %23 = sbr.rel (0) target = $region21
  $region20: #{tpu_custom_call.1} parent=0 // pred_region
    _
  $region21: #{tpu_custom_call.1} parent=0 // pred_fallthru
    _
  // Predicated region
  $region22: #{tpu_custom_call.1} parent=0 // pred_check
    _
  $region23: #{tpu_custom_call.1} parent=0 // pred_check_branch
    %25 = sbr.rel (0) target = $region25
  $region24: #{tpu_custom_call.1} parent=0 // pred_region
    _
  $region25: #{tpu_custom_call.1} parent=0 // pred_fallthru
    _
  // Predicated region
  $region26: #{tpu_custom_call.1} parent=0 // pred_check
    _
  $region27: #{tpu_custom_call.1} parent=0 // pred_check_branch
    %27 = sbr.rel (0) target = $region29
  $region28: #{tpu_custom_call.1} parent=0 // pred_region
    _
  $region29: #{tpu_custom_call.1} parent=0 // pred_fallthru
    _
  %v28 = vld [vmem:[%s0] sm:$0xff]
  %v29 = vld [vmem:[%s1] sm:$0xff]
  %v30 = vld [vmem:[%s1 + $0x8] sm:$0xff]
  %v31 = vld [vmem:[%s1 + $0x10] sm:$0xff]
  %v32 = vld [vmem:[%s1 + $0x18] sm:$0xff]
  %v33 = vld [vmem:[%s2] sm:$0x1]
  %v35 = vlaneseq
  %v36 = vshrl.u32 %v35, 7
  %v37 = vsub.s32 0, %v36
  %v38 = vrot.slane %v33, %v37
  %vm40 = vcmask 261120
  %v42 = vsel %vm40, %v28, 0
  %44 = vmatprep.subr.mxu0 0.0
  %45 = vmatpush1.msra.mxu0 0.0
  %46 = vmatprep.subr.mxu0 0.0
  %47 = vmatpush1.msra.mxu0 0.0
  %48 = vmatprep.subr.mxu0 0.0
  %49 = vmatpush1.msra.mxu0 0.0
  %50 = vmatprep.subr.mxu0 0.0
  %51 = vmatpush1.msra.mxu0 0.0
  %52 = vmatprep.subr.mxu0 0.0
  %53 = vmatpush1.msra.mxu0 0.0
  %54 = vmatprep.subr.mxu0 0.0
  %55 = vmatpush1.msra.mxu0 0.0
  %56 = vmatprep.subr.mxu0 0.0
  %57 = vmatpush1.msra.mxu0 0.0
  %58 = vmatprep.subr.mxu0 0.0
  %59 = vmatpush1.msra.mxu0 0.0
  %60 = vmatprep.subr.mxu0 0.0
  %61 = vmatpush1.msra.mxu0 0.0
  %62 = vmatprep.subr.mxu0 0.0
  %63 = vmatpush1.msra.mxu0 0.0
  %64 = vmatprep.subr.mxu0 0.0
  %65 = vmatpush1.msra.mxu0 0.0
  %66 = vmatprep.subr.mxu0 0.0
  %67 = vmatpush1.msra.mxu0 0.0
  %68 = vmatprep.subr.mxu0 0.0
  %69 = vmatpush1.msra.mxu0 %v32
  %70 = vmatprep.subr.mxu0 0.0
  %71 = vmatpush1.msra.mxu0 %v31
  %72 = vmatprep.subr.mxu0 0.0
  %73 = vmatpush1.msra.mxu0 %v30
  %74 = vmatprep.subr.mxu0 0.0
  %75 = vmatpush1.msra.mxu0 %v29
  %76 = vmatprep.subr.mxu0 0.0
  %77 = vmatpush2.msra.mxu0 0.0
  %78 = vmatprep.subr.mxu0 0.0
  %79 = vmatpush2.msra.mxu0 0.0
  %80 = vmatprep.subr.mxu0 0.0
  %81 = vmatpush2.msra.mxu0 0.0
  %82 = vmatprep.subr.mxu0 0.0
  %83 = vmatpush2.msra.mxu0 0.0
  %84 = vmatprep.subr.mxu0 0.0
  %85 = vmatpush2.msra.mxu0 0.0
  %86 = vmatprep.subr.mxu0 0.0
  %87 = vmatpush2.msra.mxu0 0.0
  %88 = vmatprep.subr.mxu0 0.0
  %89 = vmatpush2.msra.mxu0 0.0
  %90 = vmatprep.subr.mxu0 0.0
  %91 = vmatpush2.msra.mxu0 0.0
  %92 = vmatprep.subr.mxu0 0.0
  %93 = vmatpush2.msra.mxu0 0.0
  %94 = vmatprep.subr.mxu0 0.0
  %95 = vmatpush2.msra.mxu0 0.0
  %96 = vmatprep.subr.mxu0 0.0
  %97 = vmatpush2.msra.mxu0 0.0
  %98 = vmatprep.subr.mxu0 0.0
  %99 = vmatpush2.msra.mxu0 0.0
  %100 = vmatprep.subr.mxu0 0.0
  %101 = vmatpush2.msra.mxu0 0.0
  %102 = vmatprep.subr.mxu0 0.0
  %103 = vmatpush2.msra.mxu0 0.0
  %104 = vmatprep.subr.mxu0 0.0
  %105 = vmatpush2.msra.mxu0 0.0
  %106 = vmatprep.subr.mxu0 0.0
  %107 = vmatpush2.msra.mxu0 0.0
  %108 = vmatprep.mubr.f32.mxu0 0.0
  %109 = vmatmul.mubr.f32.gmra.mxu0 %v42
  %v110 = vpop.f32.mrf.mxu0
  %v111 = vadd.f32 %v38, %v110
  %v112 = vpop.f32.mrf.mxu0
  %113 = vdwg.mxu0
  %v114 = vmax.f32 %v111, 0.0
  %v115 = vld [vmem:[%s3] sm:$0xff]
  %v116 = vld [vmem:[%s3 + $0x8] sm:$0xff]
  %v117 = vld [vmem:[%s3 + $0x10] sm:$0xff]
  %v118 = vld [vmem:[%s3 + $0x18] sm:$0xff]
  %v119 = vld [vmem:[%s3 + $0x20] sm:$0xff]
  %v120 = vld [vmem:[%s3 + $0x28] sm:$0xff]
  %v121 = vld [vmem:[%s3 + $0x30] sm:$0xff]
  %v122 = vld [vmem:[%s3 + $0x38] sm:$0xff]
  %v123 = vld [vmem:[%s4] sm:$0x1]
  %v125 = vlaneseq
  %v126 = vshrl.u32 %v125, 7
  %v127 = vsub.s32 0, %v126
  %v128 = vrot.slane %v123, %v127
  %vm130 = vcmask 523264
  %v132 = vsel %vm130, %v114, 0
  %134 = vmatprep.subr.mxu0 0.0
  %135 = vmatpush1.msra.mxu0 0.0
  %136 = vmatprep.subr.mxu0 0.0
  %137 = vmatpush1.msra.mxu0 0.0
  %138 = vmatprep.subr.mxu0 0.0
  %139 = vmatpush1.msra.mxu0 0.0
  %140 = vmatprep.subr.mxu0 0.0
  %141 = vmatpush1.msra.mxu0 0.0
  %142 = vmatprep.subr.mxu0 0.0
  %143 = vmatpush1.msra.mxu0 0.0
  %144 = vmatprep.subr.mxu0 0.0
  %145 = vmatpush1.msra.mxu0 0.0
  %146 = vmatprep.subr.mxu0 0.0
  %147 = vmatpush1.msra.mxu0 0.0
  %148 = vmatprep.subr.mxu0 0.0
  %149 = vmatpush1.msra.mxu0 0.0
  %150 = vmatprep.subr.mxu0 0.0
  %151 = vmatpush1.msra.mxu0 %v122
  %152 = vmatprep.subr.mxu0 0.0
  %153 = vmatpush1.msra.mxu0 %v121
  %154 = vmatprep.subr.mxu0 0.0
  %155 = vmatpush1.msra.mxu0 %v120
  %156 = vmatprep.subr.mxu0 0.0
  %157 = vmatpush1.msra.mxu0 %v119
  %158 = vmatprep.subr.mxu0 0.0
  %159 = vmatpush1.msra.mxu0 %v118
  %160 = vmatprep.subr.mxu0 0.0
  %161 = vmatpush1.msra.mxu0 %v117
  %162 = vmatprep.subr.mxu0 0.0
  %163 = vmatpush1.msra.mxu0 %v116
  %164 = vmatprep.subr.mxu0 0.0
  %165 = vmatpush1.msra.mxu0 %v115
  %166 = vmatprep.subr.mxu0 0.0
  %167 = vmatpush2.msra.mxu0 0.0
  %168 = vmatprep.subr.mxu0 0.0
  %169 = vmatpush2.msra.mxu0 0.0
  %170 = vmatprep.subr.mxu0 0.0
  %171 = vmatpush2.msra.mxu0 0.0
  %172 = vmatprep.subr.mxu0 0.0
  %173 = vmatpush2.msra.mxu0 0.0
  %174 = vmatprep.subr.mxu0 0.0
  %175 = vmatpush2.msra.mxu0 0.0
  %176 = vmatprep.subr.mxu0 0.0
  %177 = vmatpush2.msra.mxu0 0.0
  %178 = vmatprep.subr.mxu0 0.0
  %179 = vmatpush2.msra.mxu0 0.0
  %180 = vmatprep.subr.mxu0 0.0
  %181 = vmatpush2.msra.mxu0 0.0
  %182 = vmatprep.subr.mxu0 0.0
  %183 = vmatpush2.msra.mxu0 0.0
  %184 = vmatprep.subr.mxu0 0.0
  %185 = vmatpush2.msra.mxu0 0.0
  %186 = vmatprep.subr.mxu0 0.0
  %187 = vmatpush2.msra.mxu0 0.0
  %188 = vmatprep.subr.mxu0 0.0
  %189 = vmatpush2.msra.mxu0 0.0
  %190 = vmatprep.subr.mxu0 0.0
  %191 = vmatpush2.msra.mxu0 0.0
  %192 = vmatprep.subr.mxu0 0.0
  %193 = vmatpush2.msra.mxu0 0.0
  %194 = vmatprep.subr.mxu0 0.0
  %195 = vmatpush2.msra.mxu0 0.0
  %196 = vmatprep.subr.mxu0 0.0
  %197 = vmatpush2.msra.mxu0 0.0
  %198 = vmatprep.mubr.f32.mxu0 0.0
  %199 = vmatmul.mubr.f32.gmra.mxu0 %v132
  %v200 = vpop.f32.mrf.mxu0
  %v201 = vadd.f32 %v128, %v200
  %v202 = vpop.f32.mrf.mxu0
  %203 = vdwg.mxu0
  %v204 = vmax.f32 %v201, 0.0
  %v205 = vld [vmem:[%s5] sm:$0x1]
  %v207 = vlaneseq
  %v208 = vshrl.u32 %v207, 7
  %v209 = vsub.s32 0, %v208
  %v210 = vrot.slane %v205, %v209
  %v212 = vmul.f32 %v204, %v210
  %v213 = vsel %vm40, %v212, 0.0
  %214 = vadd.xlane.f32.xlu0 %v213
  %v215 = vpop.xlane.xlu0 %214
  %v216 = vld [vmem:[#allocation2] sm:$0x1]
  %v218 = vlaneseq
  %v219 = vshrl.u32 %v218, 7
  %v220 = vsub.s32 0, %v219
  %v221 = vrot.slane %v216, %v220
  %v223 = vadd.f32 %v215, %v221
  %vm224 = vcmask 7168
  %225 = vst.msk [vmem:[%s7] sm:$0xff] %vm224, %v223
  // Predicated region
  $region30: #{tpu_custom_call.1} parent=0 // pred_check
    _
  $region31: #{tpu_custom_call.1} parent=0 // pred_check_branch
    %227 = sbr.rel (0) target = $region33
  $region32: #{tpu_custom_call.1} parent=0 // pred_region
    _
  $region33: #{tpu_custom_call.1} parent=0 // pred_fallthru
    _
  // Predicated region
  $region34: #{tpu_custom_call.1} parent=0 // pred_check
    _
  $region35: #{tpu_custom_call.1} parent=0 // pred_check_branch
    %229 = sbr.rel (0) target = $region37
  $region36: #{tpu_custom_call.1} parent=0 // pred_region
    _
  $region37: #{tpu_custom_call.1} parent=0 // pred_fallthru
    _

</llo_original>
